<compile_context>
chip_gen: v7x
topology: tpu7x:2x2x1
jax: 0.10.0
libtpu: 0.0.40
codegen_flags: <defaults>
</compile_context>

<pallas_src>
import functools

import jax
import jax.numpy as jnp
from jax import lax
from jax.experimental import pallas as pl
from jax.experimental.pallas import tpu as pltpu


# ----------------------------- Pallas kernel --------------------------------

def _layernorm_kernel(x_ref, w_ref, b_ref, o_ref, *, eps, n_total, tile_n, ragged):
    # x_ref: (1, tile_n, D); w_ref/b_ref: (1, 1, D)
    x = x_ref[...].astype(jnp.float32)
    if ragged:
        # The last N-block runs past N; its tail rows hold unspecified data.
        # Zero them so mean/var stay finite (Pallas clips the OOB writeback,
        # so these rows never reach HBM).
        n_idx = pl.program_id(1)
        row = lax.broadcasted_iota(jnp.int32, x.shape, 1)
        x = jnp.where(row < (n_total - n_idx * tile_n), x, 0.0)
    mean = jnp.mean(x, axis=-1, keepdims=True)
    xc = x - mean
    var = jnp.mean(xc * xc, axis=-1, keepdims=True)
    y = xc * lax.rsqrt(var + eps)                      # rsqrt -> EUP (free slot)
    w = w_ref[...].astype(jnp.float32)
    b = b_ref[...].astype(jnp.float32)
    o_ref[...] = (y * w + b).astype(o_ref.dtype)


def _cdiv(a, b):
    return -(-a // b)


def _choose_tile_n(B, N, D, itemsize, target_tile_bytes, min_grid):
    """Pick (tile_n, ragged). Prefers an exact divisor of N (no masking)."""
    sub = {4: 8, 2: 16, 1: 32}.get(itemsize, 8)        # sublane quantum per dtype
    row_bytes = max(1, D * itemsize)
    target_rows = max(sub, target_tile_bytes // row_bytes)

    # Enough N-steps to (a) keep each tile near the byte target and (b) give
    # the (B x n_steps) grid >= min_grid iterations for double-buffering and
    # v7x dual-TC sharding.
    want_steps = max(_cdiv(N, target_rows), _cdiv(min_grid, max(B, 1)))
    want_steps = max(1, min(want_steps, _cdiv(N, sub)))
    if want_steps <= 1:
        return N, False                                 # one full-N tile per batch row

    ideal = _cdiv(N, want_steps)
    # Exact-divisor search: multiples of `sub`, at most ~2x the byte target.
    best = None
    for d in range(sub, min(N, 2 * target_rows) + 1, sub):
        if N % d == 0:
            score = abs(d - ideal)
            if best is None or score < best[0]:
                best = (score, d)
    if best is not None:
        return best[1], False

    # Ragged fallback: grid over cdiv(N, tile_n); kernel masks the tail rows.
    tile_n = min(_cdiv(ideal, sub) * sub, _cdiv(target_rows, sub) * sub)
    tile_n = max(sub, min(tile_n, (N // sub) * sub))
    return tile_n, (N % tile_n != 0)


def layer_norm_pallas(x3, weight, bias, *, eps=1e-5, target_tile_bytes=None,
                      min_grid=8):
    """x3: (B, N, D); weight/bias: (T, D) with T in {1, B}. Returns (B, N, D)."""
    B, N, D = x3.shape
    T = weight.shape[0]
    assert bias.shape == weight.shape and weight.shape[-1] == D
    assert T in (1, B)

    itemsize = jnp.dtype(x3.dtype).itemsize

    # Per-generation VMEM capacity (v7x: 64 MiB, v5e/v6e: 128 MiB).
    try:
        vmem_cap = int(pltpu.get_tpu_info().vmem_capacity_bytes)
    except Exception:
        vmem_cap = 64 * 2**20                           # conservative (v7x)
    if target_tile_bytes is None:
        # ~4 MiB tiles on v7x, ~8 MiB on v5e/v6e.
        target_tile_bytes = int(min(8 * 2**20, max(1 * 2**20, vmem_cap // 16)))

    tile_n, ragged = _choose_tile_n(B, N, D, itemsize, target_tile_bytes, min_grid)
    n_steps = _cdiv(N, tile_n)

    # Affine params stay (T, 1, D); the batch broadcast lives in the index_map.
    w3 = weight.reshape(T, 1, D)
    b3 = bias.reshape(T, 1, D)
    if T == B:
        wb_map = lambda b, n: (b, 0, 0)
    else:                                               # shared affine (T == 1)
        wb_map = lambda b, n: (0, 0, 0)

    # VMEM budget: double-buffered in + out tiles, f32 intermediates, affine
    # params, with 2x headroom; capped at half the physical VMEM of this chip.
    tile_bytes = tile_n * D * itemsize
    f32_bytes = tile_n * D * 4                          # in-kernel f32 upcast
    wb_bytes = 2 * D * jnp.dtype(weight.dtype).itemsize
    needed = 2 * (2 * tile_bytes) + 2 * f32_bytes + 2 * wb_bytes
    vmem_limit = max(2 * needed, 16 * 2**20)
    vmem_limit = int(min(vmem_limit, vmem_cap // 2))
    vmem_limit = int(max(vmem_limit, needed + (1 << 20)))

    kernel = functools.partial(_layernorm_kernel, eps=eps, n_total=N,
                               tile_n=tile_n, ragged=ragged)
    grid = (B, n_steps)                                 # batch outer: w/b stay VMEM-resident

    return pl.pallas_call(
        kernel,
        out_shape=jax.ShapeDtypeStruct((B, N, D), x3.dtype),
        grid_spec=pltpu.PrefetchScalarGridSpec(
            num_scalar_prefetch=0,
            grid=grid,
            in_specs=[
                pl.BlockSpec((1, tile_n, D), lambda b, n: (b, n, 0)),
                pl.BlockSpec((1, 1, D), wb_map),
                pl.BlockSpec((1, 1, D), wb_map),
            ],
            out_specs=pl.BlockSpec((1, tile_n, D), lambda b, n: (b, n, 0)),
        ),
        compiler_params=pltpu.CompilerParams(
            dimension_semantics=("parallel", "parallel"),
            vmem_limit_bytes=vmem_limit),
    )(x3, w3, b3)


# --------------------- TimeDependentParameter glue (plain JAX) --------------

def init_tdp(shape, init="ones"):
    fill = jnp.ones if init == "ones" else jnp.zeros
    return dict(
        param0=fill(shape, jnp.float32),
        param1=fill(shape, jnp.float32),
        nodecay_weight=jnp.zeros(shape, jnp.float32),
        nodecay_bias=jnp.zeros(shape, jnp.float32),
    )


# TODO(synk): `exported_tdp` is not defined in the provided source; using a simple
# sigmoid-gated interpolation between param0/param1 with the nodecay affine terms.
def exported_tdp(p0, p1, nodecay_w, nodecay_b, time_condition):
    a = jax.nn.sigmoid(time_condition)[:, None]          # (T, 1)
    w = p0[None, :] * (1.0 - a) + p1[None, :] * a        # (T, dim)
    return w * nodecay_w[None, :] + nodecay_b[None, :]


def seed_time(weight_tdp, bias_tdp, log_snr):
    # Mirrors TimeDependentParameter.seed_time. The collapse-to-one-row branch
    # is a static optimization; only take it when log_snr is concrete (outside
    # jit) -- never force a traced boolean.
    assert log_snr.ndim == 1
    try:
        if bool(jnp.all(log_snr == log_snr[0])):
            log_snr = log_snr[:1]
    except jax.errors.ConcretizationTypeError:
        pass  # traced: keep per-sample rows
    t = log_snr / 4.0
    w = exported_tdp(weight_tdp["param0"], weight_tdp["param1"],
                     weight_tdp["nodecay_weight"] + 1.0,
                     weight_tdp["nodecay_bias"], t)
    b = exported_tdp(bias_tdp["param0"], bias_tdp["param1"],
                     bias_tdp["nodecay_weight"] + 1.0,
                     bias_tdp["nodecay_bias"], t)
    return w, b


def layer_norm_forward(x, weight, bias, *, eps=1e-5):
    # Mirrors LayerNorm.forward: reshape to (B, -1, dim), normalize, reshape back.
    original_shape = x.shape
    batch_size = x.shape[0]
    dim = x.shape[-1]
    x3 = x.reshape(batch_size, -1, dim)
    y = layer_norm_pallas(x3, weight, bias, eps=eps)
    return y.reshape(original_shape)


# ----------------------------- reference check ------------------------------

def ref_layer_norm(x, weight, bias, eps=1e-5):
    B, dim = x.shape[0], x.shape[-1]
    xr = x.reshape(B, -1, dim).astype(jnp.float32)
    mean = xr.mean(-1, keepdims=True)
    var = ((xr - mean) ** 2).mean(-1, keepdims=True)
    y = (xr - mean) / jnp.sqrt(var + eps)
    w = jnp.broadcast_to(weight, (B, dim))
    b = jnp.broadcast_to(bias, (B, dim))
    y = y * w[:, None, :] + b[:, None, :]
    return y.reshape(x.shape).astype(x.dtype)


if __name__ == "__main__":
    key = jax.random.PRNGKey(0)
    eps = 1e-5

    # Case 1: image-like input with a lane-dense feature dim (D = 128) and
    # distinct per-sample log-SNR -> per-batch affine path (T == B).
    B, H, W, dim = 2, 4, 16, 128
    x = jax.random.normal(key, (B, H, W, dim), dtype=jnp.float32)
    weight_tdp = init_tdp((dim,), init="ones")   # module: weight init ones_
    bias_tdp = init_tdp((dim,), init="zeros")    # module: bias init zeros_
    log_snr = jnp.array([0.5, -1.0], dtype=jnp.float32)
    weight, bias = seed_time(weight_tdp, bias_tdp, log_snr)

    out = jax.block_until_ready(layer_norm_forward(x, weight, bias, eps=eps))
    ref = ref_layer_norm(x, weight, bias, eps=eps)
    assert out.shape == x.shape and out.dtype == x.dtype
    assert jnp.allclose(out, ref, atol=1e-5, rtol=1e-5)

    # Case 2: identical log-SNR -> shared affine path (T == 1).
    log_snr1 = jnp.array([0.25, 0.25], dtype=jnp.float32)
    w1, b1 = seed_time(weight_tdp, bias_tdp, log_snr1)
    assert w1.shape[0] == 1
    out1 = jax.block_until_ready(layer_norm_forward(x, w1, b1, eps=eps))
    ref1 = ref_layer_norm(x, w1, b1, eps=eps)
    assert jnp.allclose(out1, ref1, atol=1e-5, rtol=1e-5)

    # Case 3: seq-like input where a small forced tile budget exercises the
    # exact-divisor N-tiling path (520 = 13 x 40, no pad, no masking).
    Bs, Ns = 2, 520
    xs = jax.random.normal(jax.random.PRNGKey(1), (Bs, Ns, dim), dtype=jnp.float32)
    ws, bs = seed_time(weight_tdp, bias_tdp, jnp.array([1.0, -0.5], jnp.float32))
    outs = jax.block_until_ready(
        layer_norm_pallas(xs, ws, bs, eps=eps, target_tile_bytes=32 * 1024))
    refs = ref_layer_norm(xs, ws, bs, eps=eps)
    assert jnp.allclose(outs, refs, atol=1e-5, rtol=1e-5)

    # Case 4: N with no usable divisor (140) -> ragged grid + in-kernel tail
    # masking path (no jnp.pad / slice round-trips).
    Br, Nr = 2, 140
    xr = jax.random.normal(jax.random.PRNGKey(2), (Br, Nr, dim), dtype=jnp.float32)
    wr, br = seed_time(weight_tdp, bias_tdp, jnp.array([0.1, 2.0], jnp.float32))
    outr = jax.block_until_ready(
        layer_norm_pallas(xr, wr, br, eps=eps, target_tile_bytes=16 * 1024))
    refr = ref_layer_norm(xr, wr, br, eps=eps)
    assert jnp.allclose(outr, refr, atol=1e-5, rtol=1e-5)

    print("KERNEL_OK")
</pallas_src>

<mosaic_0001>
module attributes {stable_mosaic.version = 11 : i64} {
  func.func @_layernorm_kernel(%arg0: i32, %arg1: i32, %arg2: memref<1x16x128xf32, #tpu.memory_space<vmem>>, %arg3: memref<1x1x128xf32, #tpu.memory_space<vmem>>, %arg4: memref<1x1x128xf32, #tpu.memory_space<vmem>>, %arg5: memref<1x16x128xf32, #tpu.memory_space<vmem>>) attributes {dimension_semantics = [#tpu.dimension_semantics<parallel>, #tpu.dimension_semantics<parallel>], iteration_bounds = array<i64: 2, 4>, scalar_prefetch = 0 : i64, scratch_operands = 0 : i64, tpu.core_type = #tpu.core_type<tc>, window_params = [{transform_indices = @transform_0, window_bounds = array<i64: 1, 16, 128>}, {transform_indices = @transform_1, window_bounds = array<i64: 1, 1, 128>}, {transform_indices = @transform_2, window_bounds = array<i64: 1, 1, 128>}, {transform_indices = @transform_3, window_bounds = array<i64: 1, 16, 128>}]} {
    %c0 = arith.constant 0 : index
    %c0_0 = arith.constant 0 : index
    %c0_1 = arith.constant 0 : index
    %0 = vector.load %arg2[%c0, %c0_0, %c0_1] : memref<1x16x128xf32, #tpu.memory_space<vmem>>, vector<1x16x128xf32>
    %cst = arith.constant dense<0.000000e+00> : vector<1x16xf32>
    %1 = vector.multi_reduction <add>, %0, %cst [2] : vector<1x16x128xf32> to vector<1x16xf32>
    %2 = vector.shape_cast %1 : vector<1x16xf32> to vector<1x16x1xf32>
    %cst_2 = arith.constant 1.280000e+02 : f32
    %3 = vector.broadcast %cst_2 : f32 to vector<1x16x1xf32>
    %4 = arith.divf %2, %3 : vector<1x16x1xf32>
    %5 = vector.broadcast %4 : vector<1x16x1xf32> to vector<1x16x128xf32>
    %6 = arith.subf %0, %5 : vector<1x16x128xf32>
    %7 = arith.mulf %6, %6 : vector<1x16x128xf32>
    %cst_3 = arith.constant dense<0.000000e+00> : vector<1x16xf32>
    %8 = vector.multi_reduction <add>, %7, %cst_3 [2] : vector<1x16x128xf32> to vector<1x16xf32>
    %9 = vector.shape_cast %8 : vector<1x16xf32> to vector<1x16x1xf32>
    %cst_4 = arith.constant 1.280000e+02 : f32
    %10 = vector.broadcast %cst_4 : f32 to vector<1x16x1xf32>
    %11 = arith.divf %9, %10 : vector<1x16x1xf32>
    %cst_5 = arith.constant 9.99999974E-6 : f32
    %12 = vector.broadcast %cst_5 : f32 to vector<1x16x1xf32>
    %13 = arith.addf %11, %12 : vector<1x16x1xf32>
    %14 = math.rsqrt %13 : vector<1x16x1xf32>
    %15 = vector.broadcast %14 : vector<1x16x1xf32> to vector<1x16x128xf32>
    %16 = arith.mulf %6, %15 : vector<1x16x128xf32>
    %c0_6 = arith.constant 0 : index
    %c0_7 = arith.constant 0 : index
    %c0_8 = arith.constant 0 : index
    %17 = vector.load %arg3[%c0_6, %c0_7, %c0_8] : memref<1x1x128xf32, #tpu.memory_space<vmem>>, vector<1x1x128xf32>
    %c0_9 = arith.constant 0 : index
    %c0_10 = arith.constant 0 : index
    %c0_11 = arith.constant 0 : index
    %18 = vector.load %arg4[%c0_9, %c0_10, %c0_11] : memref<1x1x128xf32, #tpu.memory_space<vmem>>, vector<1x1x128xf32>
    %19 = vector.broadcast %17 : vector<1x1x128xf32> to vector<1x16x128xf32>
    %20 = arith.mulf %16, %19 : vector<1x16x128xf32>
    %21 = vector.broadcast %18 : vector<1x1x128xf32> to vector<1x16x128xf32>
    %22 = arith.addf %20, %21 : vector<1x16x128xf32>
    %c0_12 = arith.constant 0 : index
    %c0_13 = arith.constant 0 : index
    %c0_14 = arith.constant 0 : index
    %23 = vector.load %arg5[%c0_12, %c0_13, %c0_14] : memref<1x16x128xf32, #tpu.memory_space<vmem>>, vector<1x16x128xf32>
    tpu.vector_store %arg5[%c0_12, %c0_13, %c0_14], %22 {strides = array<i32>} : memref<1x16x128xf32, #tpu.memory_space<vmem>>, vector<1x16x128xf32>,
    return
  }
  func.func @transform_0(%arg0: i32, %arg1: i32) -> (i32, i32, i32) {
    %c0_i32 = arith.constant 0 : i32
    %c0_i32_0 = arith.constant 0 : i32
    return %arg0, %arg1, %c0_i32 : i32, i32, i32
  }
  func.func @transform_1(%arg0: i32, %arg1: i32) -> (i32, i32, i32) {
    %c0_i32 = arith.constant 0 : i32
    %c0_i32_0 = arith.constant 0 : i32
    %c0_i32_1 = arith.constant 0 : i32
    return %arg0, %c0_i32, %c0_i32_0 : i32, i32, i32
  }
  func.func @transform_2(%arg0: i32, %arg1: i32) -> (i32, i32, i32) {
    %c0_i32 = arith.constant 0 : i32
    %c0_i32_0 = arith.constant 0 : i32
    %c0_i32_1 = arith.constant 0 : i32
    return %arg0, %c0_i32, %c0_i32_0 : i32, i32, i32
  }
  func.func @transform_3(%arg0: i32, %arg1: i32) -> (i32, i32, i32) {
    %c0_i32 = arith.constant 0 : i32
    %c0_i32_0 = arith.constant 0 : i32
    return %arg0, %arg1, %c0_i32 : i32, i32, i32
  }
}

</mosaic_0001>

<llo_original>
// kernel: tpu_custom_call.1
$region0: #{tpu_custom_call.1}
  #allocation0 [shape = 'u32[]', space=smem, size = 0x4, offset = 0x4, fixed_abs, tag = 'smem constant byte address 0x4 - core index']
  #allocation1 [shape = 'u32[144,128]{1,0:T(1,128)}', space=vmem, size = 0x12000, scoped, tag = 'internal scratch']
  %s0 = inlined_call_operand.hbm [shape: f32[2,64,128], index: 0, kind: input, shape index: {}]
  %s1 = inlined_call_operand.vmem [shape: f32[2,1,128], index: 1, kind: input, shape index: {}]
  %s2 = inlined_call_operand.vmem [shape: f32[2,1,128], index: 2, kind: input, shape index: {}]
  %s3 = inlined_call_operand.hbm [shape: f32[2,64,128], index: 3, kind: output, shape index: {}]
  %s4 = sld [smem:[#allocation0]]
  $region49: #{tpu_custom_call.1} parent=0
    _
  %s6 = ssub.s32 1, %s4
  %s7 = scalar_select 0, %s6, %s4
  $region1: #{tpu_custom_call.1} parent=0
    #allocation2 [shape = 'u8[16384]{0}', space=vmem, size = 0x4000, scoped, tag = 'input window, operand 0']
    #allocation3 [shape = 's32[2]{0}', space=sflag, size = 0x8, scoped, tag = 'scoped memory for tpu_custom_call.1']
    #allocation4 [shape = 's32[2]{0}', space=sflag, size = 0x8, scoped, tag = 'scoped memory for tpu_custom_call.1']
    #allocation5 [shape = 'u8[16384]{0}', space=vmem, size = 0x4000, scoped, tag = 'output window, operand 0']
    %8 = vsyncpa [#allocation3], 0
    %s9 = scalar_lea.sflag [#allocation3], 1
    %10 = vsyncpa %s9, 0
    %11 = vsyncpa [#allocation4], 0
    %s12 = scalar_lea.sflag [#allocation4], 1
    %13 = vsyncpa %s12, 0
    loop: start=0, step=1, limit=10
    $region2: #{tpu_custom_call.1} parent=1 // loop_pre_header
      _
    $region3: #{tpu_custom_call.1} parent=1 // loop_header
      %s15 = sphi 0, %s19
      %p16 = scmp.ge.s32.totalorder %s15, 10
      %s22 = sphi 0, %s34
      %s23 = sphi 0, %s30
      %s24 = sphi 0, %s22
      %s25 = sphi 0, %s23
      %s26 = sphi 0, %s24
      %s27 = sphi 0, %s25
      %s39 = sphi 0, %s41
      %s42 = sphi 0, %s39
      %s43 = sphi 0, %s42
      %s59 = sphi 0, %s43
      %s65 = sphi 0, %s67
      %s68 = sphi 0, %s65
      %s69 = sphi 0, %s68
      %s85 = sphi 0, %s69
      %s91 = sphi 0, %s93
      %s94 = sphi 0, %s91
      %s95 = sphi 0, %s94
      %s111 = sphi 0, %s95
      %s119 = sphi 0, %s121
      %s122 = sphi 0, %s119
      %s123 = sphi 0, %s122
      %s139 = sphi 0, %s123
    $region4: #{tpu_custom_call.1} parent=1 // loop_header_branch
      %18 = sbr.rel (%p16) target = $region8
    $region5: #{tpu_custom_call.1} parent=1 // loop_body
      %s20 = ssub.s32 %s15, 1
      %s21 = ssub.s32 %s15, 2
      %s28 = sadd.s32 1, %s23
      %p29 = scmp.ge.s32.totalorder %s28, 4
      %s30 = scalar_select %p29, 0, %s28
      %s31 = sadd.s32 1, %s22
      %s32 = scalar_select %p29, %s31, %s22
      %p33 = scmp.ge.s32.totalorder %s32, 2
      %s34 = scalar_select %p33, 0, %s32
      %s35 = ssub.s32 %s22, %s34
      %s36 = ssub.s32 %s23, %s30
      %s37 = sor.u32 %s35, %s36
      %p38 = scmp.eq.s32.totalorder %s37, 0
      %s40 = sadd.s32 %s39, 1
      %s41 = scalar_select %p38, %s39, %s40
      %p44 = pneg %p38
      %p45 = scmp.eq.s32.totalorder %s15, 7
      %p46 = por %p44, %p45
      %p47 = scmp.ne.s32.totalorder %s39, %s42
      %p48 = scmp.eq.s32.totalorder %s15, 0
      %p49 = por %p47, %p48
      %p50 = scmp.ne.s32.totalorder %s39, %s42
      %p51 = scmp.eq.s32.totalorder %s20, 7
      %p52 = por %p50, %p51
      %p53 = scmp.ne.s32.totalorder %s42, %s43
      %p54 = scmp.eq.s32.totalorder %s20, 0
      %p55 = por %p53, %p54
      %p56 = scmp.ne.s32.totalorder %s42, %s43
      %p57 = scmp.eq.s32.totalorder %s21, 7
      %p58 = por %p56, %p57
      %p60 = scmp.ne.s32.totalorder %s43, %s59
      %p61 = scmp.eq.s32.totalorder %s21, 0
      %p62 = por %p60, %p61
      %s63 = ssub.s32 %s22, %s34
      %p64 = scmp.eq.s32.totalorder %s63, 0
      %s66 = sadd.s32 %s65, 1
      %s67 = scalar_select %p64, %s65, %s66
      %p70 = pneg %p64
      %p71 = scmp.eq.s32.totalorder %s15, 7
      %p72 = por %p70, %p71
      %p73 = scmp.ne.s32.totalorder %s65, %s68
      %p74 = scmp.eq.s32.totalorder %s15, 0
      %p75 = por %p73, %p74
      %p76 = scmp.ne.s32.totalorder %s65, %s68
      %p77 = scmp.eq.s32.totalorder %s20, 7
      %p78 = por %p76, %p77
      %p79 = scmp.ne.s32.totalorder %s68, %s69
      %p80 = scmp.eq.s32.totalorder %s20, 0
      %p81 = por %p79, %p80
      %p82 = scmp.ne.s32.totalorder %s68, %s69
      %p83 = scmp.eq.s32.totalorder %s21, 7
      %p84 = por %p82, %p83
      %p86 = scmp.ne.s32.totalorder %s69, %s85
      %p87 = scmp.eq.s32.totalorder %s21, 0
      %p88 = por %p86, %p87
      %s89 = ssub.s32 %s22, %s34
      %p90 = scmp.eq.s32.totalorder %s89, 0
      %s92 = sadd.s32 %s91, 1
      %s93 = scalar_select %p90, %s91, %s92
      %p96 = pneg %p90
      %p97 = scmp.eq.s32.totalorder %s15, 7
      %p98 = por %p96, %p97
      %p99 = scmp.ne.s32.totalorder %s91, %s94
      %p100 = scmp.eq.s32.totalorder %s15, 0
      %p101 = por %p99, %p100
      %p102 = scmp.ne.s32.totalorder %s91, %s94
      %p103 = scmp.eq.s32.totalorder %s20, 7
      %p104 = por %p102, %p103
      %p105 = scmp.ne.s32.totalorder %s94, %s95
      %p106 = scmp.eq.s32.totalorder %s20, 0
      %p107 = por %p105, %p106
      %p108 = scmp.ne.s32.totalorder %s94, %s95
      %p109 = scmp.eq.s32.totalorder %s21, 7
      %p110 = por %p108, %p109
      %p112 = scmp.ne.s32.totalorder %s95, %s111
      %p113 = scmp.eq.s32.totalorder %s21, 0
      %p114 = por %p112, %p113
      %s115 = ssub.s32 %s22, %s34
      %s116 = ssub.s32 %s23, %s30
      %s117 = sor.u32 %s115, %s116
      %p118 = scmp.eq.s32.totalorder %s117, 0
      %s120 = sadd.s32 %s119, 1
      %s121 = scalar_select %p118, %s119, %s120
      %p124 = pneg %p118
      %p125 = scmp.eq.s32.totalorder %s15, 7
      %p126 = por %p124, %p125
      %p127 = scmp.ne.s32.totalorder %s119, %s122
      %p128 = scmp.eq.s32.totalorder %s15, 0
      %p129 = por %p127, %p128
      %p130 = scmp.ne.s32.totalorder %s119, %s122
      %p131 = scmp.eq.s32.totalorder %s20, 7
      %p132 = por %p130, %p131
      %p133 = scmp.ne.s32.totalorder %s122, %s123
      %p134 = scmp.eq.s32.totalorder %s20, 0
      %p135 = por %p133, %p134
      %p136 = scmp.ne.s32.totalorder %s122, %s123
      %p137 = scmp.eq.s32.totalorder %s21, 7
      %p138 = por %p136, %p137
      %p140 = scmp.ne.s32.totalorder %s123, %s139
      %p141 = scmp.eq.s32.totalorder %s21, 0
      %p142 = por %p140, %p141
      %p143 = scmp.le.s32.totalorder 1, %s15
      %p144 = scmp.lt.s32.totalorder %s15, 9
      %p145 = pnand %p143, %p144
      %p146 = pneg %p145
      // Predicated region
      $region9: #{tpu_custom_call.1} parent=5 // pred_check
        _
      $region10: #{tpu_custom_call.1} parent=5 // pred_check_branch
        %148 = sbr.rel (%p145) target = $region12
      $region11: #{tpu_custom_call.1} parent=5 // pred_region
        %s149 = ssub.s32 %s15, 1
      $region12: #{tpu_custom_call.1} parent=5 // pred_fallthru
        _
      %p150 = scmp.lt.s32.totalorder %s15, 8
      // Predicated region
      $region13: #{tpu_custom_call.1} parent=5 // pred_check
        %p151 = pneg %p150
      $region14: #{tpu_custom_call.1} parent=5 // pred_check_branch
        %153 = sbr.rel (%p151) target = $region16
      $region15: #{tpu_custom_call.1} parent=5 // pred_region
        // Predicated region
        $region17: #{tpu_custom_call.1} parent=15 // pred_check
          %p154 = pneg %p49
        $region18: #{tpu_custom_call.1} parent=15 // pred_check_branch
          %156 = sbr.rel (%p154) target = $region20
        $region19: #{tpu_custom_call.1} parent=15 // pred_region
          %s157 = sand.u32 %s39, 1
          %s158 = scalar_lea.sflag [#allocation3], %s157
          %s159 = sand.u32 %s39, 1
          %s160 = smul.addr %s159, 16
          %s161 = scalar_lea.vmem [#allocation2], %s160
          %s162 = smul.u32 2, %s23
          %s164 = ssub.s32 256, 256
          %165 = vsyncadd %s158, %s164
          %s166 = smul.addr %s22, 8
          %s167 = sadd.s32 %s162, %s166
          %s168 = smul.addr %s167, 128
          %s169 = scalar_lea.hbm %s0, %s168
          %s170 = sshll.u32 %s161, 4
          %s171 = int_to_ptr.vmem [resolvable:$true] %s170
          %176 = dma.hbm_to_vmem [thread:$0]  %s169, 256, %s171, %s158, 128, 128, 8
        $region20: #{tpu_custom_call.1} parent=15 // pred_fallthru
          _
        // Predicated region
        $region21: #{tpu_custom_call.1} parent=15 // pred_check
          %p177 = pneg %p75
        $region22: #{tpu_custom_call.1} parent=15 // pred_check_branch
          %179 = sbr.rel (%p177) target = $region24
        $region23: #{tpu_custom_call.1} parent=15 // pred_region
          %p180 = scmp.lt.s32.totalorder %s22, 1
          %s181 = scalar_select %p180, %s22, 1
          %s182 = scalar_lea.vmem %s1, %s181
        $region24: #{tpu_custom_call.1} parent=15 // pred_fallthru
          _
        // Predicated region
        $region25: #{tpu_custom_call.1} parent=15 // pred_check
          %p183 = pneg %p101
        $region26: #{tpu_custom_call.1} parent=15 // pred_check_branch
          %185 = sbr.rel (%p183) target = $region28
        $region27: #{tpu_custom_call.1} parent=15 // pred_region
          %p186 = scmp.lt.s32.totalorder %s22, 1
          %s187 = scalar_select %p186, %s22, 1
          %s188 = scalar_lea.vmem %s2, %s187
        $region28: #{tpu_custom_call.1} parent=15 // pred_fallthru
          _
      $region16: #{tpu_custom_call.1} parent=5 // pred_fallthru
        _
      %p189 = scmp.le.s32.totalorder 1, %s15
      %p190 = scmp.lt.s32.totalorder %s15, 9
      %p191 = pnand %p189, %p190
      %p192 = pneg %p191
      // Predicated region
      $region29: #{tpu_custom_call.1} parent=5 // pred_check
        _
      $region30: #{tpu_custom_call.1} parent=5 // pred_check_branch
        %194 = sbr.rel (%p191) target = $region32
      $region31: #{tpu_custom_call.1} parent=5 // pred_region
        %s195 = ssub.s32 %s15, 1
        %s196 = sand.u32 %s42, 1
        %s197 = scalar_lea.sflag [#allocation3], %s196
        %s198 = sand.u32 %s42, 1
        %s199 = smul.addr %s198, 16
        %s200 = scalar_lea.vmem [#allocation2], %s199
        // Predicated region
        $region33: #{tpu_custom_call.1} parent=31 // pred_check
          %p201 = pneg %p55
        $region34: #{tpu_custom_call.1} parent=31 // pred_check_branch
          %203 = sbr.rel (%p201) target = $region36
        $region35: #{tpu_custom_call.1} parent=31 // pred_region
          %204 = dma.done %s197, 256
        $region36: #{tpu_custom_call.1} parent=31 // pred_fallthru
          _
        %s205 = sand.u32 %s42, 1
        %s206 = scalar_lea.sflag [#allocation3], %s205
        %s207 = sand.u32 %s42, 1
        %s208 = smul.addr %s207, 16
        %s209 = scalar_lea.vmem [#allocation2], %s208
        %p210 = pneg %p55
        %p211 = pneg %p52
        %p212 = scmp.lt.s32.totalorder %s24, 1
        %s213 = scalar_select %p212, %s24, 1
        %s214 = scalar_lea.vmem %s1, %s213
        %p215 = pneg %p81
        %p216 = pneg %p78
        %p217 = scmp.lt.s32.totalorder %s24, 1
        %s218 = scalar_select %p217, %s24, 1
        %s219 = scalar_lea.vmem %s2, %s218
        %p220 = pneg %p107
        %p221 = pneg %p104
        %p222 = pneg %p135
        %p223 = pneg %p132
        %s224 = sand.u32 %s122, 1
        %s225 = scalar_lea.sflag [#allocation4], %s224
        %s226 = sand.u32 %s122, 1
        %s227 = smul.addr %s226, 16
        %s228 = scalar_lea.vmem [#allocation5], %s227
        %s229 = smul.u32 2, %s25
        %p230 = scmp.lt.s32.totalorder %s24, 1
        %s231 = scalar_select %p230, %s24, 1
        %s232 = scalar_lea.vmem %s1, %s231
        %p233 = scmp.lt.s32.totalorder %s24, 1
        %s234 = scalar_select %p233, %s24, 1
        %s235 = scalar_lea.vmem %s2, %s234
        %s236 = smul.u32 2, %s25
        %v237 = vld [vmem:[%s200] sm:$0xff]
        %v238 = vld [vmem:[%s200 + $0x8] sm:$0xff]
        %239 = vadd.xlane.f32.xlu0 %v237
        %v240 = vpop.xlane.xlu0 %239
        %241 = vadd.xlane.f32.xlu0 %v238
        %v242 = vpop.xlane.xlu0 %241
        %v243 = vrcp.pop 128.0
        %v244 = vmul.f32 %v240, %v243
        %v245 = vmul.f32 %v242, %v243
        %v246 = vsub.f32 %v237, %v244
        %v247 = vsub.f32 %v238, %v245
        %v248 = vmul.f32 %v246, %v246
        %v249 = vmul.f32 %v247, %v247
        %250 = vadd.xlane.f32.xlu0 %v248
        %v251 = vpop.xlane.xlu0 %250
        %252 = vadd.xlane.f32.xlu0 %v249
        %v253 = vpop.xlane.xlu0 %252
        %v254 = vmul.f32 %v251, %v243
        %v255 = vmul.f32 %v253, %v243
        %v256 = vadd.f32 %v254, 1e-05
        %v257 = vadd.f32 %v255, 1e-05
        %v258 = vrsqrt.pop %v256
        %v259 = vrsqrt.pop %v257
        %v260 = vmul.f32 %v246, %v258
        %v261 = vmul.f32 %v247, %v259
        %v262 = vld [vmem:[%s232] sm:$0x1]
        %v263 = vld [vmem:[%s235] sm:$0x1]
        %v265 = vlaneseq
        %v266 = vshrl.u32 %v265, 7
        %v267 = vsub.s32 0, %v266
        %v268 = vrot.slane %v262, %v267
        %v270 = vmul.f32 %v260, %v268
        %v271 = vmul.f32 %v261, %v268
        %v273 = vlaneseq
        %v274 = vshrl.u32 %v273, 7
        %v275 = vsub.s32 0, %v274
        %v276 = vrot.slane %v263, %v275
        %v278 = vadd.f32 %v270, %v276
        %v279 = vadd.f32 %v271, %v276
        %280 = vst [vmem:[%s228] sm:$0xff] %v278
        %281 = vst [vmem:[%s228 + $0x8] sm:$0xff] %v279
        %s282 = sand.u32 %s122, 1
        %s283 = scalar_lea.sflag [#allocation4], %s282
        %s284 = sand.u32 %s122, 1
        %s285 = smul.addr %s284, 16
        %s286 = scalar_lea.vmem [#allocation5], %s285
        // Predicated region
        $region37: #{tpu_custom_call.1} parent=31 // pred_check
          %p287 = pneg %p132
        $region38: #{tpu_custom_call.1} parent=31 // pred_check_branch
          %289 = sbr.rel (%p287) target = $region40
        $region39: #{tpu_custom_call.1} parent=31 // pred_region
          %s290 = smul.u32 2, %s25
          %s292 = ssub.s32 256, 256
          %293 = vsyncadd %s283, %s292
          %s294 = smul.addr %s24, 8
          %s295 = sadd.s32 %s290, %s294
          %s296 = smul.addr %s295, 128
          %s297 = scalar_lea.hbm %s3, %s296
          %s298 = sshll.u32 %s286, 4
          %s299 = int_to_ptr.vmem [resolvable:$true] %s298
          %304 = dma.vmem_to_hbm [thread:$0]  %s299, 256, %s297, %s283, 128, 128, 8
        $region40: #{tpu_custom_call.1} parent=31 // pred_fallthru
          _
      $region32: #{tpu_custom_call.1} parent=5 // pred_fallthru
        _
      %p305 = scmp.le.s32.totalorder 2, %s15
      // Predicated region
      $region41: #{tpu_custom_call.1} parent=5 // pred_check
        %p306 = pneg %p305
      $region42: #{tpu_custom_call.1} parent=5 // pred_check_branch
        %308 = sbr.rel (%p306) target = $region44
      $region43: #{tpu_custom_call.1} parent=5 // pred_region
        %s309 = ssub.s32 %s15, 2
        // Predicated region
        $region45: #{tpu_custom_call.1} parent=43 // pred_check
          %p310 = pneg %p138
        $region46: #{tpu_custom_call.1} parent=43 // pred_check_branch
          %312 = sbr.rel (%p310) target = $region48
        $region47: #{tpu_custom_call.1} parent=43 // pred_region
          %s313 = sand.u32 %s123, 1
          %s314 = scalar_lea.sflag [#allocation4], %s313
          %s315 = sand.u32 %s123, 1
          %s316 = smul.addr %s315, 16
          %s317 = scalar_lea.vmem [#allocation5], %s316
          %318 = dma.done %s314, 256
        $region48: #{tpu_custom_call.1} parent=43 // pred_fallthru
          _
      $region44: #{tpu_custom_call.1} parent=5 // pred_fallthru
        _
    $region6: #{tpu_custom_call.1} parent=1 // loop_footer
      %s19 = sadd.s32 1, %s15
    $region7: #{tpu_custom_call.1} parent=1 // loop_footer_branch
      %14 = sbr.rel target = $region3
    $region8: #{tpu_custom_call.1} parent=1 // loop_exit
      _
    %319 = vsyncpa [#allocation3], 1
    %s320 = scalar_lea.sflag [#allocation3], 1
    %321 = vsyncpa %s320, 1
    %322 = vsyncpa [#allocation4], 1
    %s323 = scalar_lea.sflag [#allocation4], 1
    %324 = vsyncpa %s323, 1

</llo_original>
